<compile_context>
chip_gen: v6e
topology: v6e:2x2x1
jax: 0.10.0
libtpu: 0.0.40
codegen_flags: <defaults>
</compile_context>

<pallas_src>
import jax
import jax.numpy as jnp
from jax.experimental import pallas as pl
from jax.experimental.pallas import tpu as pltpu


# ----------------------------------------------------------------------------
# Pallas kernel: fused bidirectional LSTM recurrence (grid iterates over T)
# with in-kernel Seqbn statistics accumulation.
# ----------------------------------------------------------------------------
def _bilstm_step_kernel(lens_ref, gxf_ref, gxr_ref, whhf_ref, whhr_ref,
                        yf_ref, yr_ref, statf_ref, statr_ref,
                        hf_ref, cf_ref, hr_ref, cr_ref):
    # lens_ref  : (B, 1) int32   -- sequence lengths (resident)
    # gxf_ref   : (1, B, 4H) f32 -- precomputed x-gates, forward, time t
    # gxr_ref   : (1, B, 4H) f32 -- precomputed x-gates, reverse, time T-1-t
    # whh*_ref  : (H, 4H) bf16   -- recurrent weights (resident in VMEM)
    # yf_ref    : (1, B, H) output block at time t
    # yr_ref    : (1, B, H) output block at time T-1-t
    # stat*_ref : (2, H) f32 resident accumulators: [sum; sum of squares]
    # h*/c*     : (B, H) f32 VMEM scratch, persist across the grid
    t = pl.program_id(0)
    T = pl.num_programs(0)
    H = hf_ref.shape[1]

    @pl.when(t == 0)
    def _():
        hf_ref[...] = jnp.zeros_like(hf_ref)
        cf_ref[...] = jnp.zeros_like(cf_ref)
        hr_ref[...] = jnp.zeros_like(hr_ref)
        cr_ref[...] = jnp.zeros_like(cr_ref)
        statf_ref[...] = jnp.zeros_like(statf_ref)
        statr_ref[...] = jnp.zeros_like(statr_ref)

    lens = lens_ref[...]                                   # (B, 1) int32

    def cell(gx, h, c, whh_ref, valid):
        # recurrent matmul: bf16 operands, f32 accumulation
        gates = gx + jnp.dot(h.astype(jnp.bfloat16), whh_ref[...],
                             preferred_element_type=jnp.float32)   # (B, 4H)
        i_g = jax.nn.sigmoid(gates[:, 0 * H:1 * H])
        f_g = jax.nn.sigmoid(gates[:, 1 * H:2 * H])
        g_g = jnp.tanh(gates[:, 2 * H:3 * H])
        o_g = jax.nn.sigmoid(gates[:, 3 * H:4 * H])
        c_new = f_g * c + i_g * g_g
        h_new = o_g * jnp.tanh(c_new)
        # packed-sequence semantics: padded steps keep state, emit zeros
        c_out = jnp.where(valid, c_new, c)
        h_out = jnp.where(valid, h_new, h)
        y_out = jnp.where(valid, h_new, 0.0)
        return h_out, c_out, y_out

    # forward direction: original time index t
    valid_f = t < lens
    hf, cf, yf = cell(gxf_ref[0], hf_ref[...], cf_ref[...], whhf_ref, valid_f)
    hf_ref[...] = hf
    cf_ref[...] = cf
    yf_ref[0] = yf
    statf_ref[0:1, :] += jnp.sum(yf, axis=0, keepdims=True)
    statf_ref[1:2, :] += jnp.sum(yf * yf, axis=0, keepdims=True)

    # reverse direction: original time index T-1-t.  State starts at each
    # sample's last valid step because padded steps never update it.
    valid_r = (T - 1 - t) < lens
    hr, cr, yr = cell(gxr_ref[0], hr_ref[...], cr_ref[...], whhr_ref, valid_r)
    hr_ref[...] = hr
    cr_ref[...] = cr
    yr_ref[0] = yr
    statr_ref[0:1, :] += jnp.sum(yr, axis=0, keepdims=True)
    statr_ref[1:2, :] += jnp.sum(yr * yr, axis=0, keepdims=True)


def _bidirectional_lstm(gx_cat, lens_col, whh_f, whh_r):
    """One fused pallas_call running both directions over the whole sequence.

    gx_cat: (T, B, 8H) f32 -- [forward gates | reverse gates] precomputed.
    Returns y_f, y_r (T,B,H) plus per-direction (2,H) [sum; sumsq] statistics.
    """
    T, B, G2 = gx_cat.shape
    H = G2 // 8
    G = 4 * H

    if G % 128 == 0:
        # Read the two 4H halves of the SAME array via channel-block indexing
        # (no HBM split copy).  Requires the 4H block to be lane-aligned.
        gx_f_arg, gx_r_arg = gx_cat, gx_cat
        f_spec = pl.BlockSpec((1, B, G), lambda t: (t, 0, 0))
        r_spec = pl.BlockSpec((1, B, G), lambda t: (T - 1 - t, 0, 1))
    else:
        # Fallback for unaligned H: materialize the split (extra copy).
        gx_f_arg = gx_cat[:, :, :G]
        gx_r_arg = gx_cat[:, :, G:]
        f_spec = pl.BlockSpec((1, B, G), lambda t: (t, 0, 0))
        r_spec = pl.BlockSpec((1, B, G), lambda t: (T - 1 - t, 0, 0))

    y_f, y_r, stat_f, stat_r = pl.pallas_call(
        _bilstm_step_kernel,
        out_shape=(jax.ShapeDtypeStruct((T, B, H), jnp.float32),
                   jax.ShapeDtypeStruct((T, B, H), jnp.float32),
                   jax.ShapeDtypeStruct((2, H), jnp.float32),
                   jax.ShapeDtypeStruct((2, H), jnp.float32)),
        grid=(T,),
        in_specs=[
            pl.BlockSpec((B, 1), lambda t: (0, 0)),        # seq lens (resident)
            f_spec,                                        # x-gates forward
            r_spec,                                        # x-gates reverse
            pl.BlockSpec((H, G), lambda t: (0, 0)),        # W_hh forward (resident)
            pl.BlockSpec((H, G), lambda t: (0, 0)),        # W_hh reverse (resident)
        ],
        out_specs=(
            pl.BlockSpec((1, B, H), lambda t: (t, 0, 0)),
            pl.BlockSpec((1, B, H), lambda t: (T - 1 - t, 0, 0)),
            pl.BlockSpec((2, H), lambda t: (0, 0)),        # resident accumulator
            pl.BlockSpec((2, H), lambda t: (0, 0)),        # resident accumulator
        ),
        scratch_shapes=[pltpu.VMEM((B, H), jnp.float32)] * 4,   # h_f, c_f, h_r, c_r
        compiler_params=pltpu.CompilerParams(
            dimension_semantics=("arbitrary",)),           # time carries state
    )(lens_col, gx_f_arg, gx_r_arg, whh_f, whh_r)
    return y_f, y_r, stat_f, stat_r


# ----------------------------------------------------------------------------
# Seqbn helpers: scale/shift from the in-kernel stats, plus a single-pass
# normalize kernel (only used for the final layer's materialized output).
# ----------------------------------------------------------------------------
def _bn_scale_shift(stat, gamma, beta, n_rows, eps=1e-5):
    mean = stat[0:1, :] / n_rows
    var = stat[1:2, :] / n_rows - mean * mean              # biased var (train mode)
    scale = gamma.reshape(1, -1) * jax.lax.rsqrt(var + eps)
    shift = beta.reshape(1, -1) - mean * scale
    return scale, shift


def _bn_apply_kernel(yf_ref, yr_ref, scf_ref, shf_ref, scr_ref, shr_ref, o_ref):
    H = yf_ref.shape[1]
    o_ref[:, 0:H] = yf_ref[...] * scf_ref[...] + shf_ref[...]
    o_ref[:, H:2 * H] = yr_ref[...] * scr_ref[...] + shr_ref[...]


def _bn_apply(y_f, y_r, scale_f, shift_f, scale_r, shift_r):
    """Normalize + fuse the fwd/rev concat, tiled over rows (single pass)."""
    T, B, H = y_f.shape
    N = T * B
    yf = y_f.reshape(N, H)
    yr = y_r.reshape(N, H)

    RT = N
    for cand in (512, 256, 128, 64, 32, 16, 8):
        if N % cand == 0:
            RT = cand
            break
    nt = N // RT

    out = pl.pallas_call(
        _bn_apply_kernel,
        out_shape=jax.ShapeDtypeStruct((N, 2 * H), jnp.float32),
        grid=(nt,),
        in_specs=[
            pl.BlockSpec((RT, H), lambda i: (i, 0)),   # forward half rows
            pl.BlockSpec((RT, H), lambda i: (i, 0)),   # reverse half rows
            pl.BlockSpec((1, H), lambda i: (0, 0)),    # scale fwd (resident)
            pl.BlockSpec((1, H), lambda i: (0, 0)),    # shift fwd
            pl.BlockSpec((1, H), lambda i: (0, 0)),    # scale rev
            pl.BlockSpec((1, H), lambda i: (0, 0)),    # shift rev
        ],
        out_specs=pl.BlockSpec((RT, 2 * H), lambda i: (i, 0)),
        compiler_params=pltpu.CompilerParams(
            dimension_semantics=("parallel",)),
    )(yf, yr, scale_f, shift_f, scale_r, shift_r)
    return out.reshape(T, B, 2 * H)


# ----------------------------------------------------------------------------
# Full 6-layer forward: hoisted (BN-folded) input GEMM + fused biLSTM kernel.
# ----------------------------------------------------------------------------
def bilstm_forward(x, seq_lens, params):
    """x: (T, B, inSize) f32; seq_lens: (B,) int32; returns (T, B, 2*hiSize)."""
    T, B, _ = x.shape
    N = T * B
    lens_col = seq_lens.reshape(B, 1).astype(jnp.int32)

    carry = None    # (y_f, y_r, scale_f, shift_f, scale_r, shift_r) of prev layer
    for li, layer_params in enumerate(params):
        wih_cat, b_cat, whh_f, whh_r, gamma, beta = layer_params
        H = whh_f.shape[0]

        if li == 0:
            # Hoisted input projection for both directions in ONE MXU GEMM.
            xin = x.reshape(N, -1).astype(jnp.bfloat16)
            gx_cat = (jnp.dot(xin, wih_cat, preferred_element_type=jnp.float32)
                      + b_cat).reshape(T, B, 8 * H)
        else:
            # Fold the previous layer's Seqbn (scale, shift) into this layer's
            # input projection: BN output is never materialized.
            y_f_p, y_r_p, scale_f, shift_f, scale_r, shift_r = carry
            Hp = y_f_p.shape[-1]
            scale_cat = jnp.concatenate([scale_f, scale_r], axis=1)   # (1, 2Hp)
            shift_cat = jnp.concatenate([shift_f, shift_r], axis=1)
            w_f32 = wih_cat.astype(jnp.float32)                        # (2Hp, 8H)
            w_eff = (scale_cat.reshape(-1, 1) * w_f32).astype(jnp.bfloat16)
            b_eff = jnp.dot(shift_cat, w_f32) + b_cat                  # (1, 8H) f32
            yf_flat = y_f_p.reshape(N, Hp).astype(jnp.bfloat16)
            yr_flat = y_r_p.reshape(N, Hp).astype(jnp.bfloat16)
            gx_cat = (jnp.dot(yf_flat, w_eff[:Hp], preferred_element_type=jnp.float32)
                      + jnp.dot(yr_flat, w_eff[Hp:], preferred_element_type=jnp.float32)
                      + b_eff).reshape(T, B, 8 * H)

        y_f, y_r, stat_f, stat_r = _bidirectional_lstm(gx_cat, lens_col,
                                                       whh_f, whh_r)
        scale_f, shift_f = _bn_scale_shift(stat_f, gamma[:H], beta[:H], N)
        scale_r, shift_r = _bn_scale_shift(stat_r, gamma[H:], beta[H:], N)
        carry = (y_f, y_r, scale_f, shift_f, scale_r, shift_r)

    # Final layer's Seqbn must be materialized (it is the module output).
    y_f, y_r, scale_f, shift_f, scale_r, shift_r = carry
    return _bn_apply(y_f, y_r, scale_f, shift_f, scale_r, shift_r)


# ----------------------------------------------------------------------------
# Deterministic parameter construction (PyTorch uniform(-1/sqrt(H), 1/sqrt(H)))
# ----------------------------------------------------------------------------
def init_params(key, in_size, hi_size, num_layers=6):
    params = []
    k = 1.0 / jnp.sqrt(hi_size)
    for layer in range(num_layers):
        d_in = in_size if layer == 0 else 2 * hi_size
        wih_dirs, whh_dirs, b_dirs = [], [], []
        for _direction in range(2):
            key, k1, k2, k3, k4 = jax.random.split(key, 5)
            wih = jax.random.uniform(k1, (d_in, 4 * hi_size), jnp.float32, -k, k)
            whh = jax.random.uniform(k2, (hi_size, 4 * hi_size), jnp.float32, -k, k)
            # bias = b_ih + b_hh (PyTorch gate order i, f, g, o)
            b = (jax.random.uniform(k3, (4 * hi_size,), jnp.float32, -k, k)
                 + jax.random.uniform(k4, (4 * hi_size,), jnp.float32, -k, k))
            wih_dirs.append(wih)
            whh_dirs.append(whh.astype(jnp.bfloat16))      # bf16 MXU operands
            b_dirs.append(b)
        wih_cat = jnp.concatenate(wih_dirs, axis=1).astype(jnp.bfloat16)  # (d_in, 8H)
        b_cat = jnp.concatenate(b_dirs).reshape(1, 8 * hi_size)           # f32
        gamma = jnp.ones((2 * hi_size,), jnp.float32)      # BatchNorm1d init
        beta = jnp.zeros((2 * hi_size,), jnp.float32)
        params.append((wih_cat, b_cat, whh_dirs[0], whh_dirs[1], gamma, beta))
    return params


if __name__ == "__main__":
    T, B, IN_SIZE, HI_SIZE = 8, 2, 32, 32  # inSize == hiSize (required by the module)
    key = jax.random.PRNGKey(0)
    key, kx = jax.random.split(key)
    x = jax.random.normal(kx, (T, B, IN_SIZE), jnp.float32)
    seq_lens = jnp.array([8, 5], dtype=jnp.int32)  # sorted desc, like pack_padded_sequence

    params = init_params(key, IN_SIZE, HI_SIZE)

    fwd = jax.jit(bilstm_forward)
    out = fwd(x, seq_lens, params)
    jax.block_until_ready(out)
    assert out.shape == (T, B, 2 * HI_SIZE) and out.dtype == jnp.float32
    print("KERNEL_OK")
</pallas_src>

<mosaic_0001>
module attributes {stable_mosaic.version = 11 : i64} {
  func.func @_bilstm_step_kernel(%arg0: i32, %arg1: memref<2x1xi32, #tpu.memory_space<vmem>>, %arg2: memref<1x2x128xf32, #tpu.memory_space<vmem>>, %arg3: memref<1x2x128xf32, #tpu.memory_space<vmem>>, %arg4: memref<32x128xbf16, #tpu.memory_space<vmem>>, %arg5: memref<32x128xbf16, #tpu.memory_space<vmem>>, %arg6: memref<1x2x32xf32, #tpu.memory_space<vmem>>, %arg7: memref<1x2x32xf32, #tpu.memory_space<vmem>>, %arg8: memref<2x32xf32, #tpu.memory_space<vmem>>, %arg9: memref<2x32xf32, #tpu.memory_space<vmem>>, %arg10: memref<2x32xf32, #tpu.memory_space<vmem>>, %arg11: memref<2x32xf32, #tpu.memory_space<vmem>>, %arg12: memref<2x32xf32, #tpu.memory_space<vmem>>, %arg13: memref<2x32xf32, #tpu.memory_space<vmem>>) attributes {dimension_semantics = [#tpu.dimension_semantics<arbitrary>], iteration_bounds = array<i64: 8>, scalar_prefetch = 0 : i64, scratch_operands = 4 : i64, tpu.core_type = #tpu.core_type<tc>, window_params = [{pipeline_mode = #tpu.pipeline_mode<synchronous>, transform_indices = @transform_0, window_bounds = array<i64: 2, 1>}, {transform_indices = @transform_1, window_bounds = array<i64: 1, 2, 128>}, {transform_indices = @transform_2, window_bounds = array<i64: 1, 2, 128>}, {pipeline_mode = #tpu.pipeline_mode<synchronous>, transform_indices = @transform_3, window_bounds = array<i64: 32, 128>}, {pipeline_mode = #tpu.pipeline_mode<synchronous>, transform_indices = @transform_4, window_bounds = array<i64: 32, 128>}, {transform_indices = @transform_5, window_bounds = array<i64: 1, 2, 32>}, {transform_indices = @transform_6, window_bounds = array<i64: 1, 2, 32>}, {pipeline_mode = #tpu.pipeline_mode<synchronous>, transform_indices = @transform_7, window_bounds = array<i64: 2, 32>}, {pipeline_mode = #tpu.pipeline_mode<synchronous>, transform_indices = @transform_8, window_bounds = array<i64: 2, 32>}]} {
    %c0_i32 = arith.constant 0 : i32
    %0 = arith.cmpi eq, %arg0, %c0_i32 : i32
    %1 = arith.extui %0 : i1 to i32
    %c0_i32_0 = arith.constant 0 : i32
    %2 = arith.cmpi ne, %1, %c0_i32_0 : i32
    scf.if %2 {
      %cst_62 = arith.constant 0.000000e+00 : f32
      %127 = vector.broadcast %cst_62 : f32 to vector<2x32xf32>
      %c0_63 = arith.constant 0 : index
      %c0_64 = arith.constant 0 : index
      %128 = vector.load %arg10[%c0_63, %c0_64] : memref<2x32xf32, #tpu.memory_space<vmem>>, vector<2x32xf32>
      tpu.vector_store %arg10[%c0_63, %c0_64], %127 {strides = array<i32>} : memref<2x32xf32, #tpu.memory_space<vmem>>, vector<2x32xf32>,
      %cst_65 = arith.constant 0.000000e+00 : f32
      %129 = vector.broadcast %cst_65 : f32 to vector<2x32xf32>
      %c0_66 = arith.constant 0 : index
      %c0_67 = arith.constant 0 : index
      %130 = vector.load %arg11[%c0_66, %c0_67] : memref<2x32xf32, #tpu.memory_space<vmem>>, vector<2x32xf32>
      tpu.vector_store %arg11[%c0_66, %c0_67], %129 {strides = array<i32>} : memref<2x32xf32, #tpu.memory_space<vmem>>, vector<2x32xf32>,
      %cst_68 = arith.constant 0.000000e+00 : f32
      %131 = vector.broadcast %cst_68 : f32 to vector<2x32xf32>
      %c0_69 = arith.constant 0 : index
      %c0_70 = arith.constant 0 : index
      %132 = vector.load %arg12[%c0_69, %c0_70] : memref<2x32xf32, #tpu.memory_space<vmem>>, vector<2x32xf32>
      tpu.vector_store %arg12[%c0_69, %c0_70], %131 {strides = array<i32>} : memref<2x32xf32, #tpu.memory_space<vmem>>, vector<2x32xf32>,
      %cst_71 = arith.constant 0.000000e+00 : f32
      %133 = vector.broadcast %cst_71 : f32 to vector<2x32xf32>
      %c0_72 = arith.constant 0 : index
      %c0_73 = arith.constant 0 : index
      %134 = vector.load %arg13[%c0_72, %c0_73] : memref<2x32xf32, #tpu.memory_space<vmem>>, vector<2x32xf32>
      tpu.vector_store %arg13[%c0_72, %c0_73], %133 {strides = array<i32>} : memref<2x32xf32, #tpu.memory_space<vmem>>, vector<2x32xf32>,
      %cst_74 = arith.constant 0.000000e+00 : f32
      %135 = vector.broadcast %cst_74 : f32 to vector<2x32xf32>
      %c0_75 = arith.constant 0 : index
      %c0_76 = arith.constant 0 : index
      %136 = vector.load %arg8[%c0_75, %c0_76] : memref<2x32xf32, #tpu.memory_space<vmem>>, vector<2x32xf32>
      tpu.vector_store %arg8[%c0_75, %c0_76], %135 {strides = array<i32>} : memref<2x32xf32, #tpu.memory_space<vmem>>, vector<2x32xf32>,
      %cst_77 = arith.constant 0.000000e+00 : f32
      %137 = vector.broadcast %cst_77 : f32 to vector<2x32xf32>
      %c0_78 = arith.constant 0 : index
      %c0_79 = arith.constant 0 : index
      %138 = vector.load %arg9[%c0_78, %c0_79] : memref<2x32xf32, #tpu.memory_space<vmem>>, vector<2x32xf32>
      tpu.vector_store %arg9[%c0_78, %c0_79], %137 {strides = array<i32>} : memref<2x32xf32, #tpu.memory_space<vmem>>, vector<2x32xf32>,
    } else {
    }
    %c0 = arith.constant 0 : index
    %c0_1 = arith.constant 0 : index
    %3 = vector.load %arg1[%c0, %c0_1] : memref<2x1xi32, #tpu.memory_space<vmem>>, vector<2x1xi32>
    %4 = vector.broadcast %arg0 : i32 to vector<2x1xi32>
    %5 = arith.cmpi slt, %4, %3 : vector<2x1xi32>
    %c0_2 = arith.constant 0 : index
    %c0_3 = arith.constant 0 : index
    %c0_4 = arith.constant 0 : index
    %6 = vector.load %arg2[%c0_2, %c0_3, %c0_4] : memref<1x2x128xf32, #tpu.memory_space<vmem>>, vector<1x2x128xf32>
    %7 = vector.shape_cast %6 : vector<1x2x128xf32> to vector<2x128xf32>
    %c0_5 = arith.constant 0 : index
    %c0_6 = arith.constant 0 : index
    %8 = vector.load %arg10[%c0_5, %c0_6] : memref<2x32xf32, #tpu.memory_space<vmem>>, vector<2x32xf32>
    %c0_7 = arith.constant 0 : index
    %c0_8 = arith.constant 0 : index
    %9 = vector.load %arg11[%c0_7, %c0_8] : memref<2x32xf32, #tpu.memory_space<vmem>>, vector<2x32xf32>
    %10 = arith.truncf %8 : vector<2x32xf32> to vector<2x32xbf16>
    %c0_9 = arith.constant 0 : index
    %c0_10 = arith.constant 0 : index
    %11 = vector.load %arg4[%c0_9, %c0_10] : memref<32x128xbf16, #tpu.memory_space<vmem>>, vector<32x128xbf16>
    %cst = arith.constant dense<0.000000e+00> : vector<2x128xf32>
    %12 = tpu.matmul %10, %11, %cst {dimension_numbers = #tpu.dot_dimension_numbers<[1], [0], [0], [1], [0, 0, 1, 1], [], []>} : vector<2x32xbf16>, vector<32x128xbf16>, vector<2x128xf32> -> vector<2x128xf32>
    %13 = arith.addf %7, %12 : vector<2x128xf32>
    %14 = vector.extract_strided_slice %13 {offsets = [0, 0], sizes = [2, 32], strides = [1, 1]} : vector<2x128xf32> to vector<2x32xf32>
    %15 = arith.negf %14 : vector<2x32xf32>
    %16 = math.exp %15 : vector<2x32xf32>
    %cst_11 = arith.constant 1.000000e+00 : f32
    %17 = vector.broadcast %cst_11 : f32 to vector<2x32xf32>
    %18 = arith.addf %17, %16 : vector<2x32xf32>
    %19 = arith.divf %17, %18 : vector<2x32xf32>
    %20 = vector.extract_strided_slice %13 {offsets = [0, 32], sizes = [2, 32], strides = [1, 1]} : vector<2x128xf32> to vector<2x32xf32>
    %21 = arith.negf %20 : vector<2x32xf32>
    %22 = math.exp %21 : vector<2x32xf32>
    %cst_12 = arith.constant 1.000000e+00 : f32
    %23 = vector.broadcast %cst_12 : f32 to vector<2x32xf32>
    %24 = arith.addf %23, %22 : vector<2x32xf32>
    %25 = arith.divf %23, %24 : vector<2x32xf32>
    %26 = vector.extract_strided_slice %13 {offsets = [0, 64], sizes = [2, 32], strides = [1, 1]} : vector<2x128xf32> to vector<2x32xf32>
    %27 = math.tanh %26 : vector<2x32xf32>
    %28 = vector.extract_strided_slice %13 {offsets = [0, 96], sizes = [2, 32], strides = [1, 1]} : vector<2x128xf32> to vector<2x32xf32>
    %29 = arith.negf %28 : vector<2x32xf32>
    %30 = math.exp %29 : vector<2x32xf32>
    %cst_13 = arith.constant 1.000000e+00 : f32
    %31 = vector.broadcast %cst_13 : f32 to vector<2x32xf32>
    %32 = arith.addf %31, %30 : vector<2x32xf32>
    %33 = arith.divf %31, %32 : vector<2x32xf32>
    %34 = arith.mulf %25, %9 : vector<2x32xf32>
    %35 = arith.mulf %19, %27 : vector<2x32xf32>
    %36 = arith.addf %34, %35 : vector<2x32xf32>
    %37 = math.tanh %36 : vector<2x32xf32>
    %38 = arith.mulf %33, %37 : vector<2x32xf32>
    %39 = vector.shape_cast %5 : vector<2x1xi1> to vector<2x1xi1>
    %40 = vector.broadcast %39 : vector<2x1xi1> to vector<2x32xi1>
    %41 = arith.select %40, %36, %9 : vector<2x32xi1>, vector<2x32xf32>
    %42 = vector.shape_cast %5 : vector<2x1xi1> to vector<2x1xi1>
    %43 = vector.broadcast %42 : vector<2x1xi1> to vector<2x32xi1>
    %44 = arith.select %43, %38, %8 : vector<2x32xi1>, vector<2x32xf32>
    %cst_14 = arith.constant 0.000000e+00 : f32
    %45 = vector.shape_cast %5 : vector<2x1xi1> to vector<2x1xi1>
    %46 = vector.broadcast %45 : vector<2x1xi1> to vector<2x32xi1>
    %47 = vector.broadcast %cst_14 : f32 to vector<2x32xf32>
    %48 = arith.select %46, %38, %47 : vector<2x32xi1>, vector<2x32xf32>
    %c0_15 = arith.constant 0 : index
    %c0_16 = arith.constant 0 : index
    %49 = vector.load %arg10[%c0_15, %c0_16] : memref<2x32xf32, #tpu.memory_space<vmem>>, vector<2x32xf32>
    tpu.vector_store %arg10[%c0_15, %c0_16], %44 {strides = array<i32>} : memref<2x32xf32, #tpu.memory_space<vmem>>, vector<2x32xf32>,
    %c0_17 = arith.constant 0 : index
    %c0_18 = arith.constant 0 : index
    %50 = vector.load %arg11[%c0_17, %c0_18] : memref<2x32xf32, #tpu.memory_space<vmem>>, vector<2x32xf32>
    tpu.vector_store %arg11[%c0_17, %c0_18], %41 {strides = array<i32>} : memref<2x32xf32, #tpu.memory_space<vmem>>, vector<2x32xf32>,
    %c0_19 = arith.constant 0 : index
    %c0_20 = arith.constant 0 : index
    %c0_21 = arith.constant 0 : index
    %51 = vector.load %arg6[%c0_19, %c0_20, %c0_21] : memref<1x2x32xf32, #tpu.memory_space<vmem>>, vector<1x2x32xf32>
    %52 = vector.shape_cast %51 : vector<1x2x32xf32> to vector<2x32xf32>
    %53 = vector.shape_cast %48 : vector<2x32xf32> to vector<1x2x32xf32>
    tpu.vector_store %arg6[%c0_19, %c0_20, %c0_21], %53 {strides = array<i32>} : memref<1x2x32xf32, #tpu.memory_space<vmem>>, vector<1x2x32xf32>,
    %c0_22 = arith.constant 0 : index
    %c0_23 = arith.constant 0 : index
    %54 = vector.load %arg8[%c0_22, %c0_23] : memref<2x32xf32, #tpu.memory_space<vmem>>, vector<1x32xf32>
    %cst_24 = arith.constant dense<0.000000e+00> : vector<32xf32>
    %55 = vector.multi_reduction <add>, %48, %cst_24 [0] : vector<2x32xf32> to vector<32xf32>
    %56 = vector.shape_cast %55 : vector<32xf32> to vector<1x32xf32>
    %57 = arith.addf %54, %56 : vector<1x32xf32>
    %c0_25 = arith.constant 0 : index
    %c0_26 = arith.constant 0 : index
    %58 = vector.load %arg8[%c0_25, %c0_26] : memref<2x32xf32, #tpu.memory_space<vmem>>, vector<1x32xf32>
    tpu.vector_store %arg8[%c0_25, %c0_26], %57 {strides = array<i32>} : memref<2x32xf32, #tpu.memory_space<vmem>>, vector<1x32xf32>,
    %c1 = arith.constant 1 : index
    %c0_27 = arith.constant 0 : index
    %59 = vector.load %arg8[%c1, %c0_27] : memref<2x32xf32, #tpu.memory_space<vmem>>, vector<1x32xf32>
    %60 = arith.mulf %48, %48 : vector<2x32xf32>
    %cst_28 = arith.constant dense<0.000000e+00> : vector<32xf32>
    %61 = vector.multi_reduction <add>, %60, %cst_28 [0] : vector<2x32xf32> to vector<32xf32>
    %62 = vector.shape_cast %61 : vector<32xf32> to vector<1x32xf32>
    %63 = arith.addf %59, %62 : vector<1x32xf32>
    %c1_29 = arith.constant 1 : index
    %c0_30 = arith.constant 0 : index
    %64 = vector.load %arg8[%c1_29, %c0_30] : memref<2x32xf32, #tpu.memory_space<vmem>>, vector<1x32xf32>
    tpu.vector_store %arg8[%c1_29, %c0_30], %63 {strides = array<i32>} : memref<2x32xf32, #tpu.memory_space<vmem>>, vector<1x32xf32>,
    %c7_i32 = arith.constant 7 : i32
    %65 = arith.subi %c7_i32, %arg0 : i32
    %66 = vector.broadcast %65 : i32 to vector<2x1xi32>
    %67 = arith.cmpi slt, %66, %3 : vector<2x1xi32>
    %c0_31 = arith.constant 0 : index
    %c0_32 = arith.constant 0 : index
    %c0_33 = arith.constant 0 : index
    %68 = vector.load %arg3[%c0_31, %c0_32, %c0_33] : memref<1x2x128xf32, #tpu.memory_space<vmem>>, vector<1x2x128xf32>
    %69 = vector.shape_cast %68 : vector<1x2x128xf32> to vector<2x128xf32>
    %c0_34 = arith.constant 0 : index
    %c0_35 = arith.constant 0 : index
    %70 = vector.load %arg12[%c0_34, %c0_35] : memref<2x32xf32, #tpu.memory_space<vmem>>, vector<2x32xf32>
    %c0_36 = arith.constant 0 : index
    %c0_37 = arith.constant 0 : index
    %71 = vector.load %arg13[%c0_36, %c0_37] : memref<2x32xf32, #tpu.memory_space<vmem>>, vector<2x32xf32>
    %72 = arith.truncf %70 : vector<2x32xf32> to vector<2x32xbf16>
    %c0_38 = arith.constant 0 : index
    %c0_39 = arith.constant 0 : index
    %73 = vector.load %arg5[%c0_38, %c0_39] : memref<32x128xbf16, #tpu.memory_space<vmem>>, vector<32x128xbf16>
    %cst_40 = arith.constant dense<0.000000e+00> : vector<2x128xf32>
    %74 = tpu.matmul %72, %73, %cst_40 {dimension_numbers = #tpu.dot_dimension_numbers<[1], [0], [0], [1], [0, 0, 1, 1], [], []>} : vector<2x32xbf16>, vector<32x128xbf16>, vector<2x128xf32> -> vector<2x128xf32>
    %75 = arith.addf %69, %74 : vector<2x128xf32>
    %76 = vector.extract_strided_slice %75 {offsets = [0, 0], sizes = [2, 32], strides = [1, 1]} : vector<2x128xf32> to vector<2x32xf32>
    %77 = arith.negf %76 : vector<2x32xf32>
    %78 = math.exp %77 : vector<2x32xf32>
    %cst_41 = arith.constant 1.000000e+00 : f32
    %79 = vector.broadcast %cst_41 : f32 to vector<2x32xf32>
    %80 = arith.addf %79, %78 : vector<2x32xf32>
    %81 = arith.divf %79, %80 : vector<2x32xf32>
    %82 = vector.extract_strided_slice %75 {offsets = [0, 32], sizes = [2, 32], strides = [1, 1]} : vector<2x128xf32> to vector<2x32xf32>
    %83 = arith.negf %82 : vector<2x32xf32>
    %84 = math.exp %83 : vector<2x32xf32>
    %cst_42 = arith.constant 1.000000e+00 : f32
    %85 = vector.broadcast %cst_42 : f32 to vector<2x32xf32>
    %86 = arith.addf %85, %84 : vector<2x32xf32>
    %87 = arith.divf %85, %86 : vector<2x32xf32>
    %88 = vector.extract_strided_slice %75 {offsets = [0, 64], sizes = [2, 32], strides = [1, 1]} : vector<2x128xf32> to vector<2x32xf32>
    %89 = math.tanh %88 : vector<2x32xf32>
    %90 = vector.extract_strided_slice %75 {offsets = [0, 96], sizes = [2, 32], strides = [1, 1]} : vector<2x128xf32> to vector<2x32xf32>
    %91 = arith.negf %90 : vector<2x32xf32>
    %92 = math.exp %91 : vector<2x32xf32>
    %cst_43 = arith.constant 1.000000e+00 : f32
    %93 = vector.broadcast %cst_43 : f32 to vector<2x32xf32>
    %94 = arith.addf %93, %92 : vector<2x32xf32>
    %95 = arith.divf %93, %94 : vector<2x32xf32>
    %96 = arith.mulf %87, %71 : vector<2x32xf32>
    %97 = arith.mulf %81, %89 : vector<2x32xf32>
    %98 = arith.addf %96, %97 : vector<2x32xf32>
    %99 = math.tanh %98 : vector<2x32xf32>
    %100 = arith.mulf %95, %99 : vector<2x32xf32>
    %101 = vector.shape_cast %67 : vector<2x1xi1> to vector<2x1xi1>
    %102 = vector.broadcast %101 : vector<2x1xi1> to vector<2x32xi1>
    %103 = arith.select %102, %98, %71 : vector<2x32xi1>, vector<2x32xf32>
    %104 = vector.shape_cast %67 : vector<2x1xi1> to vector<2x1xi1>
    %105 = vector.broadcast %104 : vector<2x1xi1> to vector<2x32xi1>
    %106 = arith.select %105, %100, %70 : vector<2x32xi1>, vector<2x32xf32>
    %cst_44 = arith.constant 0.000000e+00 : f32
    %107 = vector.shape_cast %67 : vector<2x1xi1> to vector<2x1xi1>
    %108 = vector.broadcast %107 : vector<2x1xi1> to vector<2x32xi1>
    %109 = vector.broadcast %cst_44 : f32 to vector<2x32xf32>
    %110 = arith.select %108, %100, %109 : vector<2x32xi1>, vector<2x32xf32>
    %c0_45 = arith.constant 0 : index
    %c0_46 = arith.constant 0 : index
    %111 = vector.load %arg12[%c0_45, %c0_46] : memref<2x32xf32, #tpu.memory_space<vmem>>, vector<2x32xf32>
    tpu.vector_store %arg12[%c0_45, %c0_46], %106 {strides = array<i32>} : memref<2x32xf32, #tpu.memory_space<vmem>>, vector<2x32xf32>,
    %c0_47 = arith.constant 0 : index
    %c0_48 = arith.constant 0 : index
    %112 = vector.load %arg13[%c0_47, %c0_48] : memref<2x32xf32, #tpu.memory_space<vmem>>, vector<2x32xf32>
    tpu.vector_store %arg13[%c0_47, %c0_48], %103 {strides = array<i32>} : memref<2x32xf32, #tpu.memory_space<vmem>>, vector<2x32xf32>,
    %c0_49 = arith.constant 0 : index
    %c0_50 = arith.constant 0 : index
    %c0_51 = arith.constant 0 : index
    %113 = vector.load %arg7[%c0_49, %c0_50, %c0_51] : memref<1x2x32xf32, #tpu.memory_space<vmem>>, vector<1x2x32xf32>
    %114 = vector.shape_cast %113 : vector<1x2x32xf32> to vector<2x32xf32>
    %115 = vector.shape_cast %110 : vector<2x32xf32> to vector<1x2x32xf32>
    tpu.vector_store %arg7[%c0_49, %c0_50, %c0_51], %115 {strides = array<i32>} : memref<1x2x32xf32, #tpu.memory_space<vmem>>, vector<1x2x32xf32>,
    %c0_52 = arith.constant 0 : index
    %c0_53 = arith.constant 0 : index
    %116 = vector.load %arg9[%c0_52, %c0_53] : memref<2x32xf32, #tpu.memory_space<vmem>>, vector<1x32xf32>
    %cst_54 = arith.constant dense<0.000000e+00> : vector<32xf32>
    %117 = vector.multi_reduction <add>, %110, %cst_54 [0] : vector<2x32xf32> to vector<32xf32>
    %118 = vector.shape_cast %117 : vector<32xf32> to vector<1x32xf32>
    %119 = arith.addf %116, %118 : vector<1x32xf32>
    %c0_55 = arith.constant 0 : index
    %c0_56 = arith.constant 0 : index
    %120 = vector.load %arg9[%c0_55, %c0_56] : memref<2x32xf32, #tpu.memory_space<vmem>>, vector<1x32xf32>
    tpu.vector_store %arg9[%c0_55, %c0_56], %119 {strides = array<i32>} : memref<2x32xf32, #tpu.memory_space<vmem>>, vector<1x32xf32>,
    %c1_57 = arith.constant 1 : index
    %c0_58 = arith.constant 0 : index
    %121 = vector.load %arg9[%c1_57, %c0_58] : memref<2x32xf32, #tpu.memory_space<vmem>>, vector<1x32xf32>
    %122 = arith.mulf %110, %110 : vector<2x32xf32>
    %cst_59 = arith.constant dense<0.000000e+00> : vector<32xf32>
    %123 = vector.multi_reduction <add>, %122, %cst_59 [0] : vector<2x32xf32> to vector<32xf32>
    %124 = vector.shape_cast %123 : vector<32xf32> to vector<1x32xf32>
    %125 = arith.addf %121, %124 : vector<1x32xf32>
    %c1_60 = arith.constant 1 : index
    %c0_61 = arith.constant 0 : index
    %126 = vector.load %arg9[%c1_60, %c0_61] : memref<2x32xf32, #tpu.memory_space<vmem>>, vector<1x32xf32>
    tpu.vector_store %arg9[%c1_60, %c0_61], %125 {strides = array<i32>} : memref<2x32xf32, #tpu.memory_space<vmem>>, vector<1x32xf32>,
    return
  }
  func.func @transform_0(%arg0: i32) -> (i32, i32) {
    %c0_i32 = arith.constant 0 : i32
    %c0_i32_0 = arith.constant 0 : i32
    %c0_i32_1 = arith.constant 0 : i32
    return %c0_i32, %c0_i32_0 : i32, i32
  }
  func.func @transform_1(%arg0: i32) -> (i32, i32, i32) {
    %c0_i32 = arith.constant 0 : i32
    %c0_i32_0 = arith.constant 0 : i32
    %c0_i32_1 = arith.constant 0 : i32
    return %arg0, %c0_i32, %c0_i32_0 : i32, i32, i32
  }
  func.func @transform_2(%arg0: i32) -> (i32, i32, i32) {
    %c7_i32 = arith.constant 7 : i32
    %0 = arith.subi %c7_i32, %arg0 : i32
    %c0_i32 = arith.constant 0 : i32
    %c1_i32 = arith.constant 1 : i32
    %c0_i32_0 = arith.constant 0 : i32
    return %0, %c0_i32, %c1_i32 : i32, i32, i32
  }
  func.func @transform_3(%arg0: i32) -> (i32, i32) {
    %c0_i32 = arith.constant 0 : i32
    %c0_i32_0 = arith.constant 0 : i32
    %c0_i32_1 = arith.constant 0 : i32
    return %c0_i32, %c0_i32_0 : i32, i32
  }
  func.func @transform_4(%arg0: i32) -> (i32, i32) {
    %c0_i32 = arith.constant 0 : i32
    %c0_i32_0 = arith.constant 0 : i32
    %c0_i32_1 = arith.constant 0 : i32
    return %c0_i32, %c0_i32_0 : i32, i32
  }
  func.func @transform_5(%arg0: i32) -> (i32, i32, i32) {
    %c0_i32 = arith.constant 0 : i32
    %c0_i32_0 = arith.constant 0 : i32
    %c0_i32_1 = arith.constant 0 : i32
    return %arg0, %c0_i32, %c0_i32_0 : i32, i32, i32
  }
  func.func @transform_6(%arg0: i32) -> (i32, i32, i32) {
    %c7_i32 = arith.constant 7 : i32
    %0 = arith.subi %c7_i32, %arg0 : i32
    %c0_i32 = arith.constant 0 : i32
    %c0_i32_0 = arith.constant 0 : i32
    %c0_i32_1 = arith.constant 0 : i32
    return %0, %c0_i32, %c0_i32_0 : i32, i32, i32
  }
  func.func @transform_7(%arg0: i32) -> (i32, i32) {
    %c0_i32 = arith.constant 0 : i32
    %c0_i32_0 = arith.constant 0 : i32
    %c0_i32_1 = arith.constant 0 : i32
    return %c0_i32, %c0_i32_0 : i32, i32
  }
  func.func @transform_8(%arg0: i32) -> (i32, i32) {
    %c0_i32 = arith.constant 0 : i32
    %c0_i32_0 = arith.constant 0 : i32
    %c0_i32_1 = arith.constant 0 : i32
    return %c0_i32, %c0_i32_0 : i32, i32
  }
}

module attributes {stable_mosaic.version = 11 : i64} {
  func.func @_bn_apply_kernel(%arg0: i32, %arg1: memref<16x32xf32, #tpu.memory_space<vmem>>, %arg2: memref<16x32xf32, #tpu.memory_space<vmem>>, %arg3: memref<1x32xf32, #tpu.memory_space<vmem>>, %arg4: memref<1x32xf32, #tpu.memory_space<vmem>>, %arg5: memref<1x32xf32, #tpu.memory_space<vmem>>, %arg6: memref<1x32xf32, #tpu.memory_space<vmem>>, %arg7: memref<16x64xf32, #tpu.memory_space<vmem>>) attributes {dimension_semantics = [#tpu.dimension_semantics<parallel>], iteration_bounds = array<i64: 1>, scalar_prefetch = 0 : i64, scratch_operands = 0 : i64, tpu.core_type = #tpu.core_type<tc>, window_params = [{transform_indices = @transform_0, window_bounds = array<i64: 16, 32>}, {transform_indices = @transform_1, window_bounds = array<i64: 16, 32>}, {pipeline_mode = #tpu.pipeline_mode<synchronous>, transform_indices = @transform_2, window_bounds = array<i64: 1, 32>}, {pipeline_mode = #tpu.pipeline_mode<synchronous>, transform_indices = @transform_3, window_bounds = array<i64: 1, 32>}, {pipeline_mode = #tpu.pipeline_mode<synchronous>, transform_indices = @transform_4, window_bounds = array<i64: 1, 32>}, {pipeline_mode = #tpu.pipeline_mode<synchronous>, transform_indices = @transform_5, window_bounds = array<i64: 1, 32>}, {transform_indices = @transform_6, window_bounds = array<i64: 16, 64>}]} {
    %c0 = arith.constant 0 : index
    %c0_0 = arith.constant 0 : index
    %0 = vector.load %arg1[%c0, %c0_0] : memref<16x32xf32, #tpu.memory_space<vmem>>, vector<16x32xf32>
    %c0_1 = arith.constant 0 : index
    %c0_2 = arith.constant 0 : index
    %1 = vector.load %arg3[%c0_1, %c0_2] : memref<1x32xf32, #tpu.memory_space<vmem>>, vector<1x32xf32>
    %2 = vector.broadcast %1 : vector<1x32xf32> to vector<16x32xf32>
    %3 = arith.mulf %0, %2 : vector<16x32xf32>
    %c0_3 = arith.constant 0 : index
    %c0_4 = arith.constant 0 : index
    %4 = vector.load %arg4[%c0_3, %c0_4] : memref<1x32xf32, #tpu.memory_space<vmem>>, vector<1x32xf32>
    %5 = vector.broadcast %4 : vector<1x32xf32> to vector<16x32xf32>
    %6 = arith.addf %3, %5 : vector<16x32xf32>
    %c0_5 = arith.constant 0 : index
    %c0_6 = arith.constant 0 : index
    %7 = vector.load %arg7[%c0_5, %c0_6] : memref<16x64xf32, #tpu.memory_space<vmem>>, vector<16x32xf32>
    tpu.vector_store %arg7[%c0_5, %c0_6], %6 {strides = array<i32>} : memref<16x64xf32, #tpu.memory_space<vmem>>, vector<16x32xf32>,
    %c0_7 = arith.constant 0 : index
    %c0_8 = arith.constant 0 : index
    %8 = vector.load %arg2[%c0_7, %c0_8] : memref<16x32xf32, #tpu.memory_space<vmem>>, vector<16x32xf32>
    %c0_9 = arith.constant 0 : index
    %c0_10 = arith.constant 0 : index
    %9 = vector.load %arg5[%c0_9, %c0_10] : memref<1x32xf32, #tpu.memory_space<vmem>>, vector<1x32xf32>
    %10 = vector.broadcast %9 : vector<1x32xf32> to vector<16x32xf32>
    %11 = arith.mulf %8, %10 : vector<16x32xf32>
    %c0_11 = arith.constant 0 : index
    %c0_12 = arith.constant 0 : index
    %12 = vector.load %arg6[%c0_11, %c0_12] : memref<1x32xf32, #tpu.memory_space<vmem>>, vector<1x32xf32>
    %13 = vector.broadcast %12 : vector<1x32xf32> to vector<16x32xf32>
    %14 = arith.addf %11, %13 : vector<16x32xf32>
    %c0_13 = arith.constant 0 : index
    %c32 = arith.constant 32 : index
    %15 = vector.load %arg7[%c0_13, %c32] : memref<16x64xf32, #tpu.memory_space<vmem>>, vector<16x32xf32>
    tpu.vector_store %arg7[%c0_13, %c32], %14 {strides = array<i32>} : memref<16x64xf32, #tpu.memory_space<vmem>>, vector<16x32xf32>,
    return
  }
  func.func @transform_0(%arg0: i32) -> (i32, i32) {
    %c0_i32 = arith.constant 0 : i32
    %c0_i32_0 = arith.constant 0 : i32
    return %arg0, %c0_i32 : i32, i32
  }
  func.func @transform_1(%arg0: i32) -> (i32, i32) {
    %c0_i32 = arith.constant 0 : i32
    %c0_i32_0 = arith.constant 0 : i32
    return %arg0, %c0_i32 : i32, i32
  }
  func.func @transform_2(%arg0: i32) -> (i32, i32) {
    %c0_i32 = arith.constant 0 : i32
    %c0_i32_0 = arith.constant 0 : i32
    %c0_i32_1 = arith.constant 0 : i32
    return %c0_i32, %c0_i32_0 : i32, i32
  }
  func.func @transform_3(%arg0: i32) -> (i32, i32) {
    %c0_i32 = arith.constant 0 : i32
    %c0_i32_0 = arith.constant 0 : i32
    %c0_i32_1 = arith.constant 0 : i32
    return %c0_i32, %c0_i32_0 : i32, i32
  }
  func.func @transform_4(%arg0: i32) -> (i32, i32) {
    %c0_i32 = arith.constant 0 : i32
    %c0_i32_0 = arith.constant 0 : i32
    %c0_i32_1 = arith.constant 0 : i32
    return %c0_i32, %c0_i32_0 : i32, i32
  }
  func.func @transform_5(%arg0: i32) -> (i32, i32) {
    %c0_i32 = arith.constant 0 : i32
    %c0_i32_0 = arith.constant 0 : i32
    %c0_i32_1 = arith.constant 0 : i32
    return %c0_i32, %c0_i32_0 : i32, i32
  }
  func.func @transform_6(%arg0: i32) -> (i32, i32) {
    %c0_i32 = arith.constant 0 : i32
    %c0_i32_0 = arith.constant 0 : i32
    return %arg0, %c0_i32 : i32, i32
  }
}

</mosaic_0001>

<llo_original>
// kernel: bilstm_forward.13
$region0: #{bilstm_forward.13}
  #allocation0 [shape = 'u32[]', space=smem, size = 0x4, offset = 0x4, fixed_abs, tag = 'smem constant byte address 0x4 - core index']
  #allocation1 [shape = 'u32[144,128]{1,0:T(1,128)}', space=vmem, size = 0x12000, scoped, tag = 'internal scratch']
  %s0 = inlined_call_operand.vmem [shape: f32[16,32], index: 0, kind: input, shape index: {}]
  %s1 = inlined_call_operand.vmem [shape: f32[16,32], index: 1, kind: input, shape index: {}]
  %s2 = inlined_call_operand.vmem [shape: f32[1,32], index: 2, kind: input, shape index: {}]
  %s3 = inlined_call_operand.vmem [shape: f32[1,32], index: 3, kind: input, shape index: {}]
  %s4 = inlined_call_operand.vmem [shape: f32[1,32], index: 4, kind: input, shape index: {}]
  %s5 = inlined_call_operand.vmem [shape: f32[1,32], index: 5, kind: input, shape index: {}]
  %s6 = inlined_call_operand.hbm [shape: f32[16,64], index: 6, kind: output, shape index: {}]
  %s7 = sld [smem:[#allocation0]]
  $region34: #{bilstm_forward.13} parent=0
    _
  %s9 = ssub.s32 1, %s7
  %s10 = scalar_select 0, %s9, %s7
  $region1: #{bilstm_forward.13} parent=0
    #allocation2 [shape = 'u8[8192]{0}', space=vmem, size = 0x2000, scoped, tag = 'output window, operand 0, single buffered']
    #allocation3 [shape = 's32[1]{0}', space=sflag, size = 0x4, scoped, tag = 'scoped memory for bilstm_forward.13']
    %11 = vsyncpa [#allocation3], 0
    // Predicated region
    $region2: #{bilstm_forward.13} parent=1 // pred_check
      _
    $region3: #{bilstm_forward.13} parent=1 // pred_check_branch
      %13 = sbr.rel (0) target = $region5
    $region4: #{bilstm_forward.13} parent=1 // pred_region
      _
    $region5: #{bilstm_forward.13} parent=1 // pred_fallthru
      _
    // Predicated region
    $region6: #{bilstm_forward.13} parent=1 // pred_check
      _
    $region7: #{bilstm_forward.13} parent=1 // pred_check_branch
      %15 = sbr.rel (0) target = $region9
    $region8: #{bilstm_forward.13} parent=1 // pred_region
      _
    $region9: #{bilstm_forward.13} parent=1 // pred_fallthru
      _
    // Predicated region
    $region10: #{bilstm_forward.13} parent=1 // pred_check
      _
    $region11: #{bilstm_forward.13} parent=1 // pred_check_branch
      %17 = sbr.rel (0) target = $region13
    $region12: #{bilstm_forward.13} parent=1 // pred_region
      _
    $region13: #{bilstm_forward.13} parent=1 // pred_fallthru
      _
    // Predicated region
    $region14: #{bilstm_forward.13} parent=1 // pred_check
      _
    $region15: #{bilstm_forward.13} parent=1 // pred_check_branch
      %19 = sbr.rel (0) target = $region17
    $region16: #{bilstm_forward.13} parent=1 // pred_region
      _
    $region17: #{bilstm_forward.13} parent=1 // pred_fallthru
      _
    // Predicated region
    $region18: #{bilstm_forward.13} parent=1 // pred_check
      _
    $region19: #{bilstm_forward.13} parent=1 // pred_check_branch
      %21 = sbr.rel (0) target = $region21
    $region20: #{bilstm_forward.13} parent=1 // pred_region
      _
    $region21: #{bilstm_forward.13} parent=1 // pred_fallthru
      _
    // Predicated region
    $region22: #{bilstm_forward.13} parent=1 // pred_check
      _
    $region23: #{bilstm_forward.13} parent=1 // pred_check_branch
      %23 = sbr.rel (0) target = $region25
    $region24: #{bilstm_forward.13} parent=1 // pred_region
      _
    $region25: #{bilstm_forward.13} parent=1 // pred_fallthru
      _
    %v24 = vld [vmem:[%s0] sm:$0xff]
    %v25 = vld [vmem:[%s0 + $0x8] sm:$0xff]
    %v26 = vld [vmem:[%s2] sm:$0x1]
    %v28 = vlaneseq
    %v29 = vshrl.u32 %v28, 7
    %v30 = vsub.s32 0, %v29
    %v31 = vrot.slane %v26, %v30
    %v33 = vmul.f32 %v24, %v31
    %v34 = vmul.f32 %v25, %v31
    %v35 = vld [vmem:[%s3] sm:$0x1]
    %v37 = vlaneseq
    %v38 = vshrl.u32 %v37, 7
    %v39 = vsub.s32 0, %v38
    %v40 = vrot.slane %v35, %v39
    %v42 = vadd.f32 %v33, %v40
    %v43 = vadd.f32 %v34, %v40
    %vm44 = vcmask 261120
    %45 = vst.msk [vmem:[#allocation2] sm:$0xff] %vm44, %v42
    %46 = vst.msk [vmem:[#allocation2 + $0x8] sm:$0xff] %vm44, %v43
    %v47 = vld [vmem:[%s1] sm:$0xff]
    %v48 = vld [vmem:[%s1 + $0x8] sm:$0xff]
    %v49 = vld [vmem:[%s4] sm:$0x1]
    %v51 = vlaneseq
    %v52 = vshrl.u32 %v51, 7
    %v53 = vsub.s32 0, %v52
    %v54 = vrot.slane %v49, %v53
    %v56 = vmul.f32 %v47, %v54
    %v57 = vmul.f32 %v48, %v54
    %v58 = vld [vmem:[%s5] sm:$0x1]
    %v60 = vlaneseq
    %v61 = vshrl.u32 %v60, 7
    %v62 = vsub.s32 0, %v61
    %v63 = vrot.slane %v58, %v62
    %v65 = vadd.f32 %v56, %v63
    %v66 = vadd.f32 %v57, %v63
    %69 = vrot.lane.b32.xlu0 %v65, 32
    %v70 = vpop.permute.xlu0 %69
    %71 = vrot.lane.b32.xlu0 %v66, 32
    %v72 = vpop.permute.xlu0 %71
    %vm75 = vcmask 523520
    %76 = vst.msk [vmem:[#allocation2] sm:$0xff] %vm75, %v70
    %77 = vst.msk [vmem:[#allocation2 + $0x8] sm:$0xff] %vm75, %v72
    // Predicated region
    $region26: #{bilstm_forward.13} parent=1 // pred_check
      _
    $region27: #{bilstm_forward.13} parent=1 // pred_check_branch
      %79 = sbr.rel (0) target = $region29
    $region28: #{bilstm_forward.13} parent=1 // pred_region
      %s81 = ssub.s32 256, 256
      %82 = vsyncadd [#allocation3], %s81
      %s83 = sshll.u32 [#allocation2], 4
      %s84 = int_to_ptr.vmem [resolvable:$true] %s83
      %89 = dma.vmem_to_hbm [thread:$0]  %s84, 256, %s6, [#allocation3], 128, 128, 8
    $region29: #{bilstm_forward.13} parent=1 // pred_fallthru
      _
    // Predicated region
    $region30: #{bilstm_forward.13} parent=1 // pred_check
      _
    $region31: #{bilstm_forward.13} parent=1 // pred_check_branch
      %91 = sbr.rel (0) target = $region33
    $region32: #{bilstm_forward.13} parent=1 // pred_region
      %92 = dma.done [#allocation3], 256
    $region33: #{bilstm_forward.13} parent=1 // pred_fallthru
      _
    %93 = vsyncpa [#allocation3], 1

// kernel: bilstm_forward.7
$region0: #{bilstm_forward.7}
  #allocation0 [shape = 'u32[]', space=smem, size = 0x4, offset = 0x4, fixed_abs, tag = 'smem constant byte address 0x4 - core index']
  #allocation1 [shape = 'u32[144,128]{1,0:T(1,128)}', space=vmem, size = 0x12000, scoped, tag = 'internal scratch']
  #allocation2 [shape = 'f32[2,32]{1,0:T(2,128)}', space=vmem, size = 0x400, scoped, tag = 'scratch operand']
  #allocation3 [shape = 'f32[2,32]{1,0:T(2,128)}', space=vmem, size = 0x400, scoped, tag = 'scratch operand']
  #allocation4 [shape = 'f32[2,32]{1,0:T(2,128)}', space=vmem, size = 0x400, scoped, tag = 'scratch operand']
  #allocation5 [shape = 'f32[2,32]{1,0:T(2,128)}', space=vmem, size = 0x400, scoped, tag = 'scratch operand']
  %s0 = inlined_call_operand.vmem [shape: s32[2,1], index: 0, kind: input, shape index: {}]
  %s1 = inlined_call_operand.vmem [shape: f32[8,2,256], index: 1, kind: input, shape index: {}, may-alias: {1,2}]
  %s2 = inlined_call_operand.vmem [shape: f32[8,2,256], index: 2, kind: input, shape index: {}, may-alias: {1,2}]
  %s3 = inlined_call_operand.vmem [shape: bf16[32,128], index: 3, kind: input, shape index: {}]
  %s4 = inlined_call_operand.vmem [shape: bf16[32,128], index: 4, kind: input, shape index: {}]
  %s5 = inlined_call_operand.vmem [shape: f32[8,2,32], index: 5, kind: output, shape index: {0}]
  %s6 = inlined_call_operand.vmem [shape: f32[8,2,32], index: 6, kind: output, shape index: {1}]
  %s7 = inlined_call_operand.vmem [shape: f32[2,32], index: 7, kind: output, shape index: {2}]
  %s8 = inlined_call_operand.vmem [shape: f32[2,32], index: 8, kind: output, shape index: {3}]
  %9 = xla_tuple %s5, %s6, %s7, %s8
  %s10 = sld [smem:[#allocation0]]
  $region81: #{bilstm_forward.7} parent=0
    _
  %s12 = ssub.s32 1, %s10
  %s13 = scalar_select 0, %s12, %s10
  loop: start=0, step=1, limit=10
  $region2: #{bilstm_forward.7} parent=0 // loop_pre_header
    _
  $region3: #{bilstm_forward.7} parent=0 // loop_header
    %s15 = sphi 0, %s19
    %p16 = scmp.ge.s32.totalorder %s15, 10
    %s23 = sphi 0, %s23
    %s25 = sphi 0, %s23
    %s26 = sphi 0, %s25
    %s40 = sphi 0, %s26
    %s46 = sphi 0, %s48
    %s49 = sphi 0, %s46
    %s50 = sphi 0, %s49
    %s66 = sphi 0, %s50
    %s74 = sphi 0, %s76
    %s77 = sphi 0, %s74
    %s78 = sphi 0, %s77
    %s94 = sphi 0, %s78
    %s98 = sphi 0, %s98
    %s100 = sphi 0, %s98
    %s101 = sphi 0, %s100
    %s115 = sphi 0, %s101
    %s119 = sphi 0, %s119
    %s121 = sphi 0, %s119
    %s122 = sphi 0, %s121
    %s136 = sphi 0, %s122
    %s142 = sphi 0, %s144
    %s145 = sphi 0, %s142
    %s146 = sphi 0, %s145
    %s162 = sphi 0, %s146
    %s170 = sphi 0, %s172
    %s173 = sphi 0, %s170
    %s174 = sphi 0, %s173
    %s190 = sphi 0, %s174
    %s194 = sphi 0, %s194
    %s196 = sphi 0, %s194
    %s197 = sphi 0, %s196
    %s211 = sphi 0, %s197
    %s215 = sphi 0, %s215
    %s217 = sphi 0, %s215
    %s218 = sphi 0, %s217
    %s232 = sphi 0, %s218
  $region4: #{bilstm_forward.7} parent=0 // loop_header_branch
    %18 = sbr.rel (%p16) target = $region8
  $region5: #{bilstm_forward.7} parent=0 // loop_body
    %s20 = ssub.s32 %s15, 1
    %s21 = ssub.s32 %s15, 2
    %s22 = sadd.s32 %s15, 1
    %s24 = sadd.s32 %s23, 1
    %p27 = scmp.eq.s32.totalorder %s15, 7
    %p28 = scmp.ne.s32.totalorder %s23, %s25
    %p29 = scmp.eq.s32.totalorder %s15, 0
    %p30 = por %p28, %p29
    %p31 = scmp.ne.s32.totalorder %s23, %s25
    %p32 = scmp.eq.s32.totalorder %s20, 7
    %p33 = por %p31, %p32
    %p34 = scmp.ne.s32.totalorder %s25, %s26
    %p35 = scmp.eq.s32.totalorder %s20, 0
    %p36 = por %p34, %p35
    %p37 = scmp.ne.s32.totalorder %s25, %s26
    %p38 = scmp.eq.s32.totalorder %s21, 7
    %p39 = por %p37, %p38
    %p41 = scmp.ne.s32.totalorder %s26, %s40
    %p42 = scmp.eq.s32.totalorder %s21, 0
    %p43 = por %p41, %p42
    %s44 = ssub.s32 %s15, %s22
    %p45 = scmp.eq.s32.totalorder %s44, 0
    %s47 = sadd.s32 %s46, 1
    %s48 = scalar_select %p45, %s46, %s47
    %p51 = pneg %p45
    %p52 = scmp.eq.s32.totalorder %s15, 7
    %p53 = por %p51, %p52
    %p54 = scmp.ne.s32.totalorder %s46, %s49
    %p55 = scmp.eq.s32.totalorder %s15, 0
    %p56 = por %p54, %p55
    %p57 = scmp.ne.s32.totalorder %s46, %s49
    %p58 = scmp.eq.s32.totalorder %s20, 7
    %p59 = por %p57, %p58
    %p60 = scmp.ne.s32.totalorder %s49, %s50
    %p61 = scmp.eq.s32.totalorder %s20, 0
    %p62 = por %p60, %p61
    %p63 = scmp.ne.s32.totalorder %s49, %s50
    %p64 = scmp.eq.s32.totalorder %s21, 7
    %p65 = por %p63, %p64
    %p67 = scmp.ne.s32.totalorder %s50, %s66
    %p68 = scmp.eq.s32.totalorder %s21, 0
    %p69 = por %p67, %p68
    %s70 = ssub.s32 7, %s15
    %s71 = ssub.s32 7, %s22
    %s72 = ssub.s32 %s70, %s71
    %p73 = scmp.eq.s32.totalorder %s72, 0
    %s75 = sadd.s32 %s74, 1
    %s76 = scalar_select %p73, %s74, %s75
    %p79 = pneg %p73
    %p80 = scmp.eq.s32.totalorder %s15, 7
    %p81 = por %p79, %p80
    %p82 = scmp.ne.s32.totalorder %s74, %s77
    %p83 = scmp.eq.s32.totalorder %s15, 0
    %p84 = por %p82, %p83
    %p85 = scmp.ne.s32.totalorder %s74, %s77
    %p86 = scmp.eq.s32.totalorder %s20, 7
    %p87 = por %p85, %p86
    %p88 = scmp.ne.s32.totalorder %s77, %s78
    %p89 = scmp.eq.s32.totalorder %s20, 0
    %p90 = por %p88, %p89
    %p91 = scmp.ne.s32.totalorder %s77, %s78
    %p92 = scmp.eq.s32.totalorder %s21, 7
    %p93 = por %p91, %p92
    %p95 = scmp.ne.s32.totalorder %s78, %s94
    %p96 = scmp.eq.s32.totalorder %s21, 0
    %p97 = por %p95, %p96
    %s99 = sadd.s32 %s98, 1
    %p102 = scmp.eq.s32.totalorder %s15, 7
    %p103 = scmp.ne.s32.totalorder %s98, %s100
    %p104 = scmp.eq.s32.totalorder %s15, 0
    %p105 = por %p103, %p104
    %p106 = scmp.ne.s32.totalorder %s98, %s100
    %p107 = scmp.eq.s32.totalorder %s20, 7
    %p108 = por %p106, %p107
    %p109 = scmp.ne.s32.totalorder %s100, %s101
    %p110 = scmp.eq.s32.totalorder %s20, 0
    %p111 = por %p109, %p110
    %p112 = scmp.ne.s32.totalorder %s100, %s101
    %p113 = scmp.eq.s32.totalorder %s21, 7
    %p114 = por %p112, %p113
    %p116 = scmp.ne.s32.totalorder %s101, %s115
    %p117 = scmp.eq.s32.totalorder %s21, 0
    %p118 = por %p116, %p117
    %s120 = sadd.s32 %s119, 1
    %p123 = scmp.eq.s32.totalorder %s15, 7
    %p124 = scmp.ne.s32.totalorder %s119, %s121
    %p125 = scmp.eq.s32.totalorder %s15, 0
    %p126 = por %p124, %p125
    %p127 = scmp.ne.s32.totalorder %s119, %s121
    %p128 = scmp.eq.s32.totalorder %s20, 7
    %p129 = por %p127, %p128
    %p130 = scmp.ne.s32.totalorder %s121, %s122
    %p131 = scmp.eq.s32.totalorder %s20, 0
    %p132 = por %p130, %p131
    %p133 = scmp.ne.s32.totalorder %s121, %s122
    %p134 = scmp.eq.s32.totalorder %s21, 7
    %p135 = por %p133, %p134
    %p137 = scmp.ne.s32.totalorder %s122, %s136
    %p138 = scmp.eq.s32.totalorder %s21, 0
    %p139 = por %p137, %p138
    %s140 = ssub.s32 %s15, %s22
    %p141 = scmp.eq.s32.totalorder %s140, 0
    %s143 = sadd.s32 %s142, 1
    %s144 = scalar_select %p141, %s142, %s143
    %p147 = pneg %p141
    %p148 = scmp.eq.s32.totalorder %s15, 7
    %p149 = por %p147, %p148
    %p150 = scmp.ne.s32.totalorder %s142, %s145
    %p151 = scmp.eq.s32.totalorder %s15, 0
    %p152 = por %p150, %p151
    %p153 = scmp.ne.s32.totalorder %s142, %s145
    %p154 = scmp.eq.s32.totalorder %s20, 7
    %p155 = por %p153, %p154
    %p156 = scmp.ne.s32.totalorder %s145, %s146
    %p157 = scmp.eq.s32.totalorder %s20, 0
    %p158 = por %p156, %p157
    %p159 = scmp.ne.s32.totalorder %s145, %s146
    %p160 = scmp.eq.s32.totalorder %s21, 7
    %p161 = por %p159, %p160
    %p163 = scmp.ne.s32.totalorder %s146, %s162
    %p164 = scmp.eq.s32.totalorder %s21, 0
    %p165 = por %p163, %p164
    %s166 = ssub.s32 7, %s15
    %s167 = ssub.s32 7, %s22
    %s168 = ssub.s32 %s166, %s167
    %p169 = scmp.eq.s32.totalorder %s168, 0
    %s171 = sadd.s32 %s170, 1
    %s172 = scalar_select %p169, %s170, %s171
    %p175 = pneg %p169
    %p176 = scmp.eq.s32.totalorder %s15, 7
    %p177 = por %p175, %p176
    %p178 = scmp.ne.s32.totalorder %s170, %s173
    %p179 = scmp.eq.s32.totalorder %s15, 0
    %p180 = por %p178, %p179
    %p181 = scmp.ne.s32.totalorder %s170, %s173
    %p182 = scmp.eq.s32.totalorder %s20, 7
    %p183 = por %p181, %p182
    %p184 = scmp.ne.s32.totalorder %s173, %s174
    %p185 = scmp.eq.s32.totalorder %s20, 0
    %p186 = por %p184, %p185
    %p187 = scmp.ne.s32.totalorder %s173, %s174
    %p188 = scmp.eq.s32.totalorder %s21, 7
    %p189 = por %p187, %p188
    %p191 = scmp.ne.s32.totalorder %s174, %s190
    %p192 = scmp.eq.s32.totalorder %s21, 0
    %p193 = por %p191, %p192
    %s195 = sadd.s32 %s194, 1
    %p198 = scmp.eq.s32.totalorder %s15, 7
    %p199 = scmp.ne.s32.totalorder %s194, %s196
    %p200 = scmp.eq.s32.totalorder %s15, 0
    %p201 = por %p199, %p200
    %p202 = scmp.ne.s32.totalorder %s194, %s196
    %p203 = scmp.eq.s32.totalorder %s20, 7
    %p204 = por %p202, %p203
    %p205 = scmp.ne.s32.totalorder %s196, %s197
    %p206 = scmp.eq.s32.totalorder %s20, 0
    %p207 = por %p205, %p206
    %p208 = scmp.ne.s32.totalorder %s196, %s197
    %p209 = scmp.eq.s32.totalorder %s21, 7
    %p210 = por %p208, %p209
    %p212 = scmp.ne.s32.totalorder %s197, %s211
    %p213 = scmp.eq.s32.totalorder %s21, 0
    %p214 = por %p212, %p213
    %s216 = sadd.s32 %s215, 1
    %p219 = scmp.eq.s32.totalorder %s15, 7
    %p220 = scmp.ne.s32.totalorder %s215, %s217
    %p221 = scmp.eq.s32.totalorder %s15, 0
    %p222 = por %p220, %p221
    %p223 = scmp.ne.s32.totalorder %s215, %s217
    %p224 = scmp.eq.s32.totalorder %s20, 7
    %p225 = por %p223, %p224
    %p226 = scmp.ne.s32.totalorder %s217, %s218
    %p227 = scmp.eq.s32.totalorder %s20, 0
    %p228 = por %p226, %p227
    %p229 = scmp.ne.s32.totalorder %s217, %s218
    %p230 = scmp.eq.s32.totalorder %s21, 7
    %p231 = por %p229, %p230
    %p233 = scmp.ne.s32.totalorder %s218, %s232
    %p234 = scmp.eq.s32.totalorder %s21, 0
    %p235 = por %p233, %p234
    %p236 = scmp.le.s32.totalorder 1, %s15
    %p237 = scmp.lt.s32.totalorder %s15, 9
    %p238 = pnand %p236, %p237
    %p239 = pneg %p238
    // Predicated region
    $region9: #{bilstm_forward.7} parent=5 // pred_check
      _
    $region10: #{bilstm_forward.7} parent=5 // pred_check_branch
      %241 = sbr.rel (%p238) target = $region12
    $region11: #{bilstm_forward.7} parent=5 // pred_region
      %s242 = ssub.s32 %s15, 1
      // Predicated region
      $region13: #{bilstm_forward.7} parent=11 // pred_check
        %p243 = pneg %p36
      $region14: #{bilstm_forward.7} parent=11 // pred_check_branch
        %245 = sbr.rel (%p243) target = $region16
      $region15: #{bilstm_forward.7} parent=11 // pred_region
        _
      $region16: #{bilstm_forward.7} parent=11 // pred_fallthru
        _
      // Predicated region
      $region17: #{bilstm_forward.7} parent=11 // pred_check
        %p246 = pneg %p111
      $region18: #{bilstm_forward.7} parent=11 // pred_check_branch
        %248 = sbr.rel (%p246) target = $region20
      $region19: #{bilstm_forward.7} parent=11 // pred_region
        _
      $region20: #{bilstm_forward.7} parent=11 // pred_fallthru
        _
      // Predicated region
      $region21: #{bilstm_forward.7} parent=11 // pred_check
        %p249 = pneg %p132
      $region22: #{bilstm_forward.7} parent=11 // pred_check_branch
        %251 = sbr.rel (%p249) target = $region24
      $region23: #{bilstm_forward.7} parent=11 // pred_region
        _
      $region24: #{bilstm_forward.7} parent=11 // pred_fallthru
        _
    $region12: #{bilstm_forward.7} parent=5 // pred_fallthru
      _
    %p252 = scmp.lt.s32.totalorder %s15, 8
    // Predicated region
    $region25: #{bilstm_forward.7} parent=5 // pred_check
      %p253 = pneg %p252
    $region26: #{bilstm_forward.7} parent=5 // pred_check_branch
      %255 = sbr.rel (%p253) target = $region28
    $region27: #{bilstm_forward.7} parent=5 // pred_region
      // Predicated region
      $region29: #{bilstm_forward.7} parent=27 // pred_check
        %p256 = pneg %p56
      $region30: #{bilstm_forward.7} parent=27 // pred_check_branch
        %258 = sbr.rel (%p256) target = $region32
      $region31: #{bilstm_forward.7} parent=27 // pred_region
        %p259 = scmp.lt.s32.totalorder %s15, 7
        %s260 = scalar_select %p259, %s15, 7
        %s261 = smul.addr %s260, 2
        %s262 = smul.addr %s261, 2
        %s263 = scalar_lea.vmem %s1, %s262
      $region32: #{bilstm_forward.7} parent=27 // pred_fallthru
        _
      // Predicated region
      $region33: #{bilstm_forward.7} parent=27 // pred_check
        %p264 = pneg %p84
      $region34: #{bilstm_forward.7} parent=27 // pred_check_branch
        %266 = sbr.rel (%p264) target = $region36
      $region35: #{bilstm_forward.7} parent=27 // pred_region
        %s267 = ssub.s32 7, %s15
        %p268 = scmp.lt.s32.totalorder %s267, 7
        %s269 = scalar_select %p268, %s267, 7
        %s270 = smul.addr %s269, 2
        %s271 = sadd.s32 1, %s270
        %s272 = smul.addr %s271, 2
        %s273 = scalar_lea.vmem %s2, %s272
        %s274 = ssub.s32 7, %s15
      $region36: #{bilstm_forward.7} parent=27 // pred_fallthru
        _
    $region28: #{bilstm_forward.7} parent=5 // pred_fallthru
      _
    %p275 = scmp.le.s32.totalorder 1, %s15
    %p276 = scmp.lt.s32.totalorder %s15, 9
    %p277 = pnand %p275, %p276
    %p278 = pneg %p277
    // Predicated region
    $region37: #{bilstm_forward.7} parent=5 // pred_check
      _
    $region38: #{bilstm_forward.7} parent=5 // pred_check_branch
      %280 = sbr.rel (%p277) target = $region40
    $region39: #{bilstm_forward.7} parent=5 // pred_region
      %s281 = ssub.s32 %s15, 1
      %p282 = pneg %p36
      %p283 = pneg %p33
      %p284 = scmp.lt.s32.totalorder %s20, 7
      %s285 = scalar_select %p284, %s20, 7
      %s286 = smul.addr %s285, 2
      %s287 = smul.addr %s286, 2
      %s288 = scalar_lea.vmem %s1, %s287
      %p289 = pneg %p62
      %p290 = pneg %p59
      %s291 = ssub.s32 7, %s20
      %p292 = scmp.lt.s32.totalorder %s291, 7
      %s293 = scalar_select %p292, %s291, 7
      %s294 = smul.addr %s293, 2
      %s295 = sadd.s32 1, %s294
      %s296 = smul.addr %s295, 2
      %s297 = scalar_lea.vmem %s2, %s296
      %p298 = pneg %p90
      %p299 = pneg %p87
      %p300 = pneg %p111
      %p301 = pneg %p108
      %p302 = pneg %p132
      %p303 = pneg %p129
      %p304 = pneg %p158
      %p305 = pneg %p155
      %p306 = scmp.lt.s32.totalorder %s20, 7
      %s307 = scalar_select %p306, %s20, 7
      %s308 = smul.addr %s307, 2
      %s309 = scalar_lea.vmem %s5, %s308
      %p310 = pneg %p186
      %p311 = pneg %p183
      %s312 = ssub.s32 7, %s20
      %p313 = scmp.lt.s32.totalorder %s312, 7
      %s314 = scalar_select %p313, %s312, 7
      %s315 = smul.addr %s314, 2
      %s316 = scalar_lea.vmem %s6, %s315
      %p317 = pneg %p207
      %p318 = pneg %p204
      %p319 = pneg %p228
      %p320 = pneg %p225
      %p321 = scmp.lt.s32.totalorder %s20, 7
      %s322 = scalar_select %p321, %s20, 7
      %s323 = smul.addr %s322, 2
      %s324 = smul.addr %s323, 2
      %s325 = scalar_lea.vmem %s1, %s324
      %s326 = ssub.s32 7, %s20
      %p327 = scmp.lt.s32.totalorder %s326, 7
      %s328 = scalar_select %p327, %s326, 7
      %s329 = smul.addr %s328, 2
      %s330 = sadd.s32 1, %s329
      %s331 = smul.addr %s330, 2
      %s332 = scalar_lea.vmem %s2, %s331
      %s333 = ssub.s32 7, %s20
      %p334 = scmp.lt.s32.totalorder %s20, 7
      %s335 = scalar_select %p334, %s20, 7
      %s336 = smul.addr %s335, 2
      %s337 = scalar_lea.vmem %s5, %s336
      %s338 = ssub.s32 7, %s20
      %p339 = scmp.lt.s32.totalorder %s338, 7
      %s340 = scalar_select %p339, %s338, 7
      %s341 = smul.addr %s340, 2
      %s342 = scalar_lea.vmem %s6, %s341
      %s343 = ssub.s32 7, %s20
      %p345 = scmp.eq.s32.totalorder %s20, 0
      // Predicated region
      $region41: #{bilstm_forward.7} parent=39 // pred_check
        %p346 = pneg %p345
      $region42: #{bilstm_forward.7} parent=39 // pred_check_branch
        %348 = sbr.rel (%p346) target = $region44
      $region43: #{bilstm_forward.7} parent=39 // pred_region
        %vm349 = vcmask 254976
        %350 = vst.msk [vmem:[#allocation2] sm:$0x3] %vm349, 0.0
        %351 = vst.msk [vmem:[#allocation3] sm:$0x3] %vm349, 0.0
        %352 = vst.msk [vmem:[#allocation4] sm:$0x3] %vm349, 0.0
        %353 = vst.msk [vmem:[#allocation5] sm:$0x3] %vm349, 0.0
        %354 = vst.msk [vmem:[%s7] sm:$0x3] %vm349, 0.0
        %355 = vst.msk [vmem:[%s8] sm:$0x3] %vm349, 0.0
      $region44: #{bilstm_forward.7} parent=39 // pred_fallthru
        _
      %v356 = vld [vmem:[%s0] sm:$0x3]
      %v357 = vstv %s20
      %vm358 = vcmp.lt.s32.totalorder %v357, %v356
      %v359 = vld [vmem:[%s325] sm:$0x3]
      %v360 = vld [vmem:[#allocation2] sm:$0x3]
      %v361 = vld [vmem:[#allocation3] sm:$0x3]
      %v362 = vpack.c.bf16 %v360, %v360
      %v363 = vld [vmem:[%s3] sm:$0xf]
      %v364 = vld [vmem:[%s3 + $0x4] sm:$0xf]
      %v365 = vld [vmem:[%s3 + $0x8] sm:$0xf]
      %v366 = vld [vmem:[%s3 + $0xc] sm:$0xf]
      %v371 = vunpack.c.l.b16 %v363
      %v372 = vunpack.c.l.b16 %v364
      %v373 = vunpack.c.l.b16 %v365
      %v374 = vunpack.c.l.b16 %v366
      %v375 = vpack.c.b16 %v372, %v371
      %v376 = vpack.c.b16 %v374, %v373
      %vm379 = vcmask 261120
      %v381 = vsel %vm379, %v362, 0
      %383 = vmatprep.subr.bf16.mxu0 0
      %384 = vmatpush1.bf16.msra.mxu0 0
      %385 = vmatprep.subr.bf16.mxu0 0
      %386 = vmatpush1.bf16.msra.mxu0 0
      %387 = vmatprep.subr.bf16.mxu0 0
      %388 = vmatpush1.bf16.msra.mxu0 0
      %389 = vmatprep.subr.bf16.mxu0 0
      %390 = vmatpush1.bf16.msra.mxu0 0
      %391 = vmatprep.subr.bf16.mxu0 0
      %392 = vmatpush1.bf16.msra.mxu0 0
      %393 = vmatprep.subr.bf16.mxu0 0
      %394 = vmatpush1.bf16.msra.mxu0 0
      %395 = vmatprep.subr.bf16.mxu0 0
      %396 = vmatpush1.bf16.msra.mxu0 %v376
      %397 = vmatprep.subr.bf16.mxu0 0
      %398 = vmatpush1.bf16.msra.mxu0 %v375
      %399 = vmatprep.subr.bf16.mxu0 0
      %400 = vmatpush2.bf16.msra.mxu0 0
      %401 = vmatprep.subr.bf16.mxu0 0
      %402 = vmatpush2.bf16.msra.mxu0 0
      %403 = vmatprep.subr.bf16.mxu0 0
      %404 = vmatpush2.bf16.msra.mxu0 0
      %405 = vmatprep.subr.bf16.mxu0 0
      %406 = vmatpush2.bf16.msra.mxu0 0
      %407 = vmatprep.subr.bf16.mxu0 0
      %408 = vmatpush2.bf16.msra.mxu0 0
      %409 = vmatprep.subr.bf16.mxu0 0
      %410 = vmatpush2.bf16.msra.mxu0 0
      %411 = vmatprep.subr.bf16.mxu0 0
      %412 = vmatpush2.bf16.msra.mxu0 0
      %413 = vmatprep.subr.bf16.mxu0 0
      %414 = vmatpush2.bf16.msra.mxu0 0
      %415 = vmatprep.mubr.bf16.mxu0 0
      %416 = vmatmul.mubr.bf16.gmra.mxu0 %v381
      %v417 = vpop.f32.mrf.mxu0
      %v418 = vadd.f32 0.0, %v417
      %v419 = vpop.f32.mrf.mxu0
      %v420 = vpop.f32.mrf.mxu0
      %v421 = vpop.f32.mrf.mxu0
      %422 = vdwg.mxu0
      %v423 = vadd.f32 %v359, %v418
      %v424 = vxor.u32 %v423, 2147483648
      %v425 = vmul.f32 %v424, 1.442695
      %v426 = vpow.pop %v425
      %v427 = vadd.f32 %v426, 1.0
      %v428 = vrcp.pop %v427
      %v429 = vmul.f32 1.0, %v428
      %v430 = vtanh.pop %v423
      %432 = vrot.lane.b32.xlu0 %v361, 32
      %v433 = vpop.permute.xlu0 %432
      %v435 = vmul.f32 %v429, %v433
      %437 = vrot.lane.b32.xlu0 %v430, 64
      %v438 = vpop.permute.xlu0 %437
      %v440 = vmul.f32 %v429, %v438
      %442 = vrot.lane.b32.xlu0 %v440, 32
      %v443 = vpop.permute.xlu0 %442
      %v445 = vadd.f32 %v435, %v443
      %v446 = vtanh.pop %v445
      %448 = vrot.lane.b32.xlu0 %v446, 64
      %v449 = vpop.permute.xlu0 %448
      %v451 = vmul.f32 %v429, %v449
      %v452 = vsel %vm358, 1, 0
      %453 = vset.pattern.permute.xlu0 0
      %454 = vperm.xlu0 %453, %v452
      %v455 = vpop.permute.xlu0 %454
      %vm456 = vcmp.eq.s32.totalorder %v455, 1
      %v457 = vsel %vm456, %v445, %v433
      %459 = vrot.lane.b32.xlu0 %v360, 96
      %v460 = vpop.permute.xlu0 %459
      %v462 = vsel %vm456, %v451, %v460
      %v463 = vsel %vm456, %v451, 0.0
      %465 = vrot.lane.b32.xlu0 %v462, 32
      %v466 = vpop.permute.xlu0 %465
      %vm468 = vcmask 254976
      %469 = vst.msk [vmem:[#allocation2] sm:$0x3] %vm468, %v466
      %471 = vrot.lane.b32.xlu0 %v457, 96
      %v472 = vpop.permute.xlu0 %471
      %474 = vst.msk [vmem:[#allocation3] sm:$0x3] %vm468, %v472
      %476 = vrot.lane.b32.xlu0 %v463, 32
      %v477 = vpop.permute.xlu0 %476
      %479 = vst.msk [vmem:[%s337] sm:$0x3] %vm468, %v477
      %v480 = vld [vmem:[%s7] sm:$0x1]
      %vm481 = vcmask 1042176
      %v482 = vsel %vm481, %v463, 0.0
      %v483 = vrot.slane %v482, 4
      %v484 = vadd.f32 %v482, %v483
      %v485 = vrot.slane %v484, 2
      %v486 = vadd.f32 %v484, %v485
      %v487 = vrot.slane %v486, 1
      %v488 = vadd.f32 %v486, %v487
      %490 = vrot.lane.b32.xlu0 %v488, 32
      %v491 = vpop.permute.xlu0 %490
      %v493 = vadd.f32 %v480, %v491
      %vm494 = vcmask 253952
      %495 = vst.msk [vmem:[%s7] sm:$0x1] %vm494, %v493
      %v496 = vld [vmem:[%s7 + $0x1] sm:$0x1]
      %v497 = vmul.f32 %v463, %v463
      %v498 = vsel %vm481, %v497, 0.0
      %v499 = vrot.slane %v498, 4
      %v500 = vadd.f32 %v498, %v499
      %v501 = vrot.slane %v500, 2
      %v502 = vadd.f32 %v500, %v501
      %v503 = vrot.slane %v502, 1
      %v504 = vadd.f32 %v502, %v503
      %506 = vrot.lane.b32.xlu0 %v504, 32
      %v507 = vpop.permute.xlu0 %506
      %v509 = vadd.f32 %v496, %v507
      %510 = vst.msk [vmem:[%s7 + $0x1] sm:$0x1] %vm494, %v509
      %s511 = ssub.s32 7, %s20
      %v512 = vstv %s511
      %vm513 = vcmp.lt.s32.totalorder %v512, %v356
      %v514 = vld [vmem:[%s332] sm:$0x3]
      %v515 = vld [vmem:[#allocation4] sm:$0x3]
      %v516 = vld [vmem:[#allocation5] sm:$0x3]
      %v517 = vpack.c.bf16 %v515, %v515
      %v518 = vld [vmem:[%s4] sm:$0xf]
      %v519 = vld [vmem:[%s4 + $0x4] sm:$0xf]
      %v520 = vld [vmem:[%s4 + $0x8] sm:$0xf]
      %v521 = vld [vmem:[%s4 + $0xc] sm:$0xf]
      %v526 = vunpack.c.l.b16 %v518
      %v527 = vunpack.c.l.b16 %v519
      %v528 = vunpack.c.l.b16 %v520
      %v529 = vunpack.c.l.b16 %v521
      %v530 = vpack.c.b16 %v527, %v526
      %v531 = vpack.c.b16 %v529, %v528
      %v535 = vsel %vm379, %v517, 0
      %537 = vmatprep.subr.bf16.mxu0 0
      %538 = vmatpush1.bf16.msra.mxu0 0
      %539 = vmatprep.subr.bf16.mxu0 0
      %540 = vmatpush1.bf16.msra.mxu0 0
      %541 = vmatprep.subr.bf16.mxu0 0
      %542 = vmatpush1.bf16.msra.mxu0 0
      %543 = vmatprep.subr.bf16.mxu0 0
      %544 = vmatpush1.bf16.msra.mxu0 0
      %545 = vmatprep.subr.bf16.mxu0 0
      %546 = vmatpush1.bf16.msra.mxu0 0
      %547 = vmatprep.subr.bf16.mxu0 0
      %548 = vmatpush1.bf16.msra.mxu0 0
      %549 = vmatprep.subr.bf16.mxu0 0
      %550 = vmatpush1.bf16.msra.mxu0 %v531
      %551 = vmatprep.subr.bf16.mxu0 0
      %552 = vmatpush1.bf16.msra.mxu0 %v530
      %553 = vmatprep.subr.bf16.mxu0 0
      %554 = vmatpush2.bf16.msra.mxu0 0
      %555 = vmatprep.subr.bf16.mxu0 0
      %556 = vmatpush2.bf16.msra.mxu0 0
      %557 = vmatprep.subr.bf16.mxu0 0
      %558 = vmatpush2.bf16.msra.mxu0 0
      %559 = vmatprep.subr.bf16.mxu0 0
      %560 = vmatpush2.bf16.msra.mxu0 0
      %561 = vmatprep.subr.bf16.mxu0 0
      %562 = vmatpush2.bf16.msra.mxu0 0
      %563 = vmatprep.subr.bf16.mxu0 0
      %564 = vmatpush2.bf16.msra.mxu0 0
      %565 = vmatprep.subr.bf16.mxu0 0
      %566 = vmatpush2.bf16.msra.mxu0 0
      %567 = vmatprep.subr.bf16.mxu0 0
      %568 = vmatpush2.bf16.msra.mxu0 0
      %569 = vmatprep.mubr.bf16.mxu0 0
      %570 = vmatmul.mubr.bf16.gmra.mxu0 %v535
      %v571 = vpop.f32.mrf.mxu0
      %v572 = vadd.f32 0.0, %v571
      %v573 = vpop.f32.mrf.mxu0
      %v574 = vpop.f32.mrf.mxu0
      %v575 = vpop.f32.mrf.mxu0
      %576 = vdwg.mxu0
      %v577 = vadd.f32 %v514, %v572
      %v578 = vxor.u32 %v577, 2147483648
      %v579 = vmul.f32 %v578, 1.442695
      %v580 = vpow.pop %v579
      %v581 = vadd.f32 %v580, 1.0
      %v582 = vrcp.pop %v581
      %v583 = vmul.f32 1.0, %v582
      %v584 = vtanh.pop %v577
      %586 = vrot.lane.b32.xlu0 %v516, 32
      %v587 = vpop.permute.xlu0 %586
      %v589 = vmul.f32 %v583, %v587
      %591 = vrot.lane.b32.xlu0 %v584, 64
      %v592 = vpop.permute.xlu0 %591
      %v594 = vmul.f32 %v583, %v592
      %596 = vrot.lane.b32.xlu0 %v594, 32
      %v597 = vpop.permute.xlu0 %596
      %v599 = vadd.f32 %v589, %v597
      %v600 = vtanh.pop %v599
      %602 = vrot.lane.b32.xlu0 %v600, 64
      %v603 = vpop.permute.xlu0 %602
      %v605 = vmul.f32 %v583, %v603
      %v606 = vsel %vm513, 1, 0
      %607 = vset.pattern.permute.xlu0 0
      %608 = vperm.xlu0 %607, %v606
      %v609 = vpop.permute.xlu0 %608
      %vm610 = vcmp.eq.s32.totalorder %v609, 1
      %v611 = vsel %vm610, %v599, %v587
      %613 = vrot.lane.b32.xlu0 %v515, 96
      %v614 = vpop.permute.xlu0 %613
      %v616 = vsel %vm610, %v605, %v614
      %v617 = vsel %vm610, %v605, 0.0
      %619 = vrot.lane.b32.xlu0 %v616, 32
      %v620 = vpop.permute.xlu0 %619
      %622 = vst.msk [vmem:[#allocation4] sm:$0x3] %vm468, %v620
      %624 = vrot.lane.b32.xlu0 %v611, 96
      %v625 = vpop.permute.xlu0 %624
      %627 = vst.msk [vmem:[#allocation5] sm:$0x3] %vm468, %v625
      %629 = vrot.lane.b32.xlu0 %v617, 32
      %v630 = vpop.permute.xlu0 %629
      %632 = vst.msk [vmem:[%s342] sm:$0x3] %vm468, %v630
      %v633 = vld [vmem:[%s8] sm:$0x1]
      %v634 = vsel %vm481, %v617, 0.0
      %v635 = vrot.slane %v634, 4
      %v636 = vadd.f32 %v634, %v635
      %v637 = vrot.slane %v636, 2
      %v638 = vadd.f32 %v636, %v637
      %v639 = vrot.slane %v638, 1
      %v640 = vadd.f32 %v638, %v639
      %642 = vrot.lane.b32.xlu0 %v640, 32
      %v643 = vpop.permute.xlu0 %642
      %v645 = vadd.f32 %v633, %v643
      %646 = vst.msk [vmem:[%s8] sm:$0x1] %vm494, %v645
      %v647 = vld [vmem:[%s8 + $0x1] sm:$0x1]
      %v648 = vmul.f32 %v617, %v617
      %v649 = vsel %vm481, %v648, 0.0
      %v650 = vrot.slane %v649, 4
      %v651 = vadd.f32 %v649, %v650
      %v652 = vrot.slane %v651, 2
      %v653 = vadd.f32 %v651, %v652
      %v654 = vrot.slane %v653, 1
      %v655 = vadd.f32 %v653, %v654
      %657 = vrot.lane.b32.xlu0 %v655, 32
      %v658 = vpop.permute.xlu0 %657
      %v660 = vadd.f32 %v647, %v658
      %661 = vst.msk [vmem:[%s8 + $0x1] sm:$0x1] %vm494, %v660
      %p662 = scmp.lt.s32.totalorder %s20, 7
      %s663 = scalar_select %p662, %s20, 7
      %s664 = smul.addr %s663, 2
      %s665 = scalar_lea.vmem %s5, %s664
      %s666 = ssub.s32 7, %s20
      %p667 = scmp.lt.s32.totalorder %s666, 7
      %s668 = scalar_select %p667, %s666, 7
      %s669 = smul.addr %s668, 2
      %s670 = scalar_lea.vmem %s6, %s669
      // Predicated region
      $region45: #{bilstm_forward.7} parent=39 // pred_check
        %p671 = pneg %p155
      $region46: #{bilstm_forward.7} parent=39 // pred_check_branch
        %673 = sbr.rel (%p671) target = $region48
      $region47: #{bilstm_forward.7} parent=39 // pred_region
        _
      $region48: #{bilstm_forward.7} parent=39 // pred_fallthru
        _
      // Predicated region
      $region49: #{bilstm_forward.7} parent=39 // pred_check
        %p674 = pneg %p183
      $region50: #{bilstm_forward.7} parent=39 // pred_check_branch
        %676 = sbr.rel (%p674) target = $region52
      $region51: #{bilstm_forward.7} parent=39 // pred_region
        %s677 = ssub.s32 7, %s20
      $region52: #{bilstm_forward.7} parent=39 // pred_fallthru
        _
      // Predicated region
      $region53: #{bilstm_forward.7} parent=39 // pred_check
        %p678 = pneg %p204
      $region54: #{bilstm_forward.7} parent=39 // pred_check_branch
        %680 = sbr.rel (%p678) target = $region56
      $region55: #{bilstm_forward.7} parent=39 // pred_region
        _
      $region56: #{bilstm_forward.7} parent=39 // pred_fallthru
        _
      // Predicated region
      $region57: #{bilstm_forward.7} parent=39 // pred_check
        %p681 = pneg %p225
      $region58: #{bilstm_forward.7} parent=39 // pred_check_branch
        %683 = sbr.rel (%p681) target = $region60
      $region59: #{bilstm_forward.7} parent=39 // pred_region
        _
      $region60: #{bilstm_forward.7} parent=39 // pred_fallthru
        _
      // Predicated region
      $region61: #{bilstm_forward.7} parent=39 // pred_check
        %p684 = pneg %p204
      $region62: #{bilstm_forward.7} parent=39 // pred_check_branch
        %686 = sbr.rel (%p684) target = $region64
      $region63: #{bilstm_forward.7} parent=39 // pred_region
        _
      $region64: #{bilstm_forward.7} parent=39 // pred_fallthru
        _
      // Predicated region
      $region65: #{bilstm_forward.7} parent=39 // pred_check
        %p687 = pneg %p225
      $region66: #{bilstm_forward.7} parent=39 // pred_check_branch
        %689 = sbr.rel (%p687) target = $region68
      $region67: #{bilstm_forward.7} parent=39 // pred_region
        _
      $region68: #{bilstm_forward.7} parent=39 // pred_fallthru
        _
    $region40: #{bilstm_forward.7} parent=5 // pred_fallthru
      _
    %p690 = scmp.le.s32.totalorder 2, %s15
    // Predicated region
    $region69: #{bilstm_forward.7} parent=5 // pred_check
      %p691 = pneg %p690
    $region70: #{bilstm_forward.7} parent=5 // pred_check_branch
      %693 = sbr.rel (%p691) target = $region72
    $region71: #{bilstm_forward.7} parent=5 // pred_region
      %s694 = ssub.s32 %s15, 2
      // Predicated region
      $region73: #{bilstm_forward.7} parent=71 // pred_check
        %p695 = pneg %p161
      $region74: #{bilstm_forward.7} parent=71 // pred_check_branch
        %697 = sbr.rel (%p695) target = $region76
      $region75: #{bilstm_forward.7} parent=71 // pred_region
        %p698 = scmp.lt.s32.totalorder %s21, 7
        %s699 = scalar_select %p698, %s21, 7
        %s700 = smul.addr %s699, 2
        %s701 = scalar_lea.vmem %s5, %s700
      $region76: #{bilstm_forward.7} parent=71 // pred_fallthru
        _
      // Predicated region
      $region77: #{bilstm_forward.7} parent=71 // pred_check
        %p702 = pneg %p189
      $region78: #{bilstm_forward.7} parent=71 // pred_check_branch
        %704 = sbr.rel (%p702) target = $region80
      $region79: #{bilstm_forward.7} parent=71 // pred_region
        %s705 = ssub.s32 7, %s21
        %p706 = scmp.lt.s32.totalorder %s705, 7
        %s707 = scalar_select %p706, %s705, 7
        %s708 = smul.addr %s707, 2
        %s709 = scalar_lea.vmem %s6, %s708
      $region80: #{bilstm_forward.7} parent=71 // pred_fallthru
        _
    $region72: #{bilstm_forward.7} parent=5 // pred_fallthru
      _
  $region6: #{bilstm_forward.7} parent=0 // loop_footer
    %s19 = sadd.s32 1, %s15
  $region7: #{bilstm_forward.7} parent=0 // loop_footer_branch
    %14 = sbr.rel target = $region3
  $region8: #{bilstm_forward.7} parent=0 // loop_exit
    _

</llo_original>
